<compile_context>
chip_gen: v7x
topology: tpu7x:2x2x1
jax: 0.10.0
libtpu: 0.0.40
codegen_flags: <defaults>
</compile_context>

<pallas_src>
import jax
import jax.numpy as jnp
from jax.experimental import pallas as pl
from jax.experimental.pallas import tpu as pltpu

SMOOTH = 1.0


def _round_up(x, m):
    return (x + m - 1) // m * m


def _dice_partial_kernel(p_ref, t_ref, inter_ref, denom_ref):
    # p_ref, t_ref       : (R, T)   bf16 input tiles (T a multiple of 128)
    # inter_ref, denom_ref: (R, 128) f32 accumulators, resident across the spatial axis
    @pl.when(pl.program_id(1) == 0)
    def _init():
        inter_ref[...] = jnp.zeros_like(inter_ref)
        denom_ref[...] = jnp.zeros_like(denom_ref)

    p = jax.nn.sigmoid(p_ref[...].astype(jnp.float32))   # EUP; f32 compute (v5e safe)
    t = t_ref[...].astype(jnp.float32)

    pt = p * t          # intersection contribution
    pd = p + t          # denominator contribution (single merged term)

    # Fold T lanes down to 128 with pure VPU adds (lane-block-aligned static slices,
    # no cross-lane XLU work in the hot loop).
    k_blocks = pt.shape[-1] // 128
    inter_part = pt[:, 0:128]
    denom_part = pd[:, 0:128]
    for k in range(1, k_blocks):
        lo = k * 128
        inter_part = inter_part + pt[:, lo:lo + 128]
        denom_part = denom_part + pd[:, lo:lo + 128]

    inter_ref[...] += inter_part
    denom_ref[...] += denom_part


def per_channel_dice_loss(predictions, targets, mask, *, block_rows=None, block_cols=None):
    """predictions, targets: (N, C, H, W); mask: (C,) bool. Returns scalar f32 loss."""
    n, c, h, w = predictions.shape
    nc, hw = n * c, h * w

    # bf16 transfer (targets are exactly representable), f32 compute inside the kernel.
    p2 = predictions.reshape(nc, hw).astype(jnp.bfloat16)
    t2 = targets.reshape(nc, hw).astype(jnp.bfloat16)

    # Tile sizes: rows multiple of 8 (sublanes), cols multiple of 128 (lanes).
    if block_rows is None:
        block_rows = min(256, _round_up(nc, 8))
    if block_cols is None:
        block_cols = min(2048, _round_up(hw, 128))
    R, T = block_rows, block_cols
    nc_pad = _round_up(nc, R)
    hw_pad = _round_up(hw, T)

    if nc_pad != nc or hw_pad != hw:
        # Pad predictions with a huge negative (sigmoid -> 0) and targets with 0 so
        # padded columns contribute nothing; padded rows are sliced off afterwards.
        p2 = jnp.pad(p2, ((0, nc_pad - nc), (0, hw_pad - hw)), constant_values=-1e9)
        t2 = jnp.pad(t2, ((0, nc_pad - nc), (0, hw_pad - hw)), constant_values=0.0)

    grid = (nc_pad // R, hw_pad // T)

    # VMEM budget: double-buffered bf16 inputs + f32 accumulator outputs, with headroom.
    dbuf_bytes = 2 * (2 * R * T * 2) + 2 * (2 * R * 128 * 4)
    vmem_limit = min(max(4 * dbuf_bytes, 16 * 1024 * 1024), 64 * 1024 * 1024)

    cost = pl.CostEstimate(
        flops=4 * nc_pad * hw_pad,                       # mul + add + 2 accumulates / elem
        transcendentals=nc_pad * hw_pad,                 # sigmoid
        bytes_accessed=2 * nc_pad * hw_pad * 2 + 2 * nc_pad * 128 * 4,
    )

    inter_out, denom_out = pl.pallas_call(
        _dice_partial_kernel,
        out_shape=(
            jax.ShapeDtypeStruct((nc_pad, 128), jnp.float32),
            jax.ShapeDtypeStruct((nc_pad, 128), jnp.float32),
        ),
        grid=grid,
        in_specs=[
            pl.BlockSpec((R, T), lambda i, j: (i, j)),
            pl.BlockSpec((R, T), lambda i, j: (i, j)),
        ],
        out_specs=[
            pl.BlockSpec((R, 128), lambda i, j: (i, 0)),   # accumulator: same block across j
            pl.BlockSpec((R, 128), lambda i, j: (i, 0)),
        ],
        compiler_params=pltpu.CompilerParams(
            dimension_semantics=("parallel", "arbitrary"),
            vmem_limit_bytes=vmem_limit,
        ),
        cost_estimate=cost,
    )(p2, t2)

    # Tiny epilogue in plain JAX (single XLU-style reduce + dice math + masked mean).
    inter = jnp.sum(inter_out[:nc], axis=-1)              # (N*C,)
    denom = jnp.sum(denom_out[:nc], axis=-1)               # (N*C,)
    dice = (2.0 * inter + SMOOTH) / (denom + SMOOTH)
    dice = dice.reshape(n, c)
    loss_per_channel = 1.0 - jnp.mean(dice, axis=0)        # (C,)
    m = mask.astype(jnp.float32)
    return jnp.sum(loss_per_channel * m) / jnp.sum(m)


def _reference(predictions, targets, mask):
    """Pure-JAX reference mirroring the PyTorch module semantics."""
    n, c, h, w = predictions.shape
    p = jax.nn.sigmoid(predictions.astype(jnp.float32)).reshape(n, c, -1)
    t = targets.astype(jnp.float32).reshape(n, c, -1)
    inter = jnp.sum(p * t, axis=-1)
    dice = (2.0 * inter + SMOOTH) / (jnp.sum(p, -1) + jnp.sum(t, -1) + SMOOTH)
    loss_c = 1.0 - jnp.mean(dice, axis=0)                  # (C,)
    m = mask.astype(jnp.float32)
    return jnp.sum(loss_c * m) / jnp.sum(m)


if __name__ == "__main__":
    key = jax.random.PRNGKey(0)
    k1, k2 = jax.random.split(key)

    N, C, H, W = 2, 4, 16, 16
    predictions = jax.random.normal(k1, (N, C, H, W), dtype=jnp.float32)
    targets = (jax.random.uniform(k2, (N, C, H, W)) > 0.5).astype(jnp.float32)
    mask = jnp.array([True, True, False, True])            # channel 2 excluded

    # block_cols=128 exercises the multi-step spatial accumulation (grid = (1, 2)).
    loss = per_channel_dice_loss(predictions, targets, mask, block_cols=128)
    loss = jax.block_until_ready(loss)

    # Tight check against a reference fed the same bf16-rounded predictions
    # (validates the kernel math independent of the deliberate bf16 transfer).
    ref_bf16_in = _reference(
        predictions.astype(jnp.bfloat16).astype(jnp.float32), targets, mask)
    assert jnp.allclose(loss, ref_bf16_in, atol=1e-5, rtol=1e-5), (loss, ref_bf16_in)

    # Loose check against the full-f32 reference (bf16 transfer perturbs the loss
    # only at the 1e-4 level).
    ref_f32 = _reference(predictions, targets, mask)
    assert jnp.allclose(loss, ref_f32, atol=2e-3, rtol=2e-3), (loss, ref_f32)

    print("KERNEL_OK")
</pallas_src>

<mosaic_0001>
module attributes {stable_mosaic.version = 11 : i64} {
  func.func @_dice_partial_kernel(%arg0: i32, %arg1: i32, %arg2: memref<8x128xbf16, #tpu.memory_space<vmem>>, %arg3: memref<8x128xbf16, #tpu.memory_space<vmem>>, %arg4: memref<8x128xf32, #tpu.memory_space<vmem>>, %arg5: memref<8x128xf32, #tpu.memory_space<vmem>>) attributes {dimension_semantics = [#tpu.dimension_semantics<parallel>, #tpu.dimension_semantics<arbitrary>], iteration_bounds = array<i64: 1, 2>, scalar_prefetch = 0 : i64, scratch_operands = 0 : i64, tpu.core_type = #tpu.core_type<tc>, window_params = [{transform_indices = @transform_0, window_bounds = array<i64: 8, 128>}, {transform_indices = @transform_1, window_bounds = array<i64: 8, 128>}, {transform_indices = @transform_2, window_bounds = array<i64: 8, 128>}, {transform_indices = @transform_3, window_bounds = array<i64: 8, 128>}]} {
    %c0_i32 = arith.constant 0 : i32
    %0 = arith.cmpi eq, %arg1, %c0_i32 : i32
    %1 = arith.extui %0 : i1 to i32
    %c0_i32_0 = arith.constant 0 : i32
    %2 = arith.cmpi ne, %1, %c0_i32_0 : i32
    scf.if %2 {
      %cst_12 = arith.constant 0.000000e+00 : f32
      %20 = vector.broadcast %cst_12 : f32 to vector<8x128xf32>
      %c0_13 = arith.constant 0 : index
      %c0_14 = arith.constant 0 : index
      %21 = vector.load %arg4[%c0_13, %c0_14] : memref<8x128xf32, #tpu.memory_space<vmem>>, vector<8x128xf32>
      tpu.vector_store %arg4[%c0_13, %c0_14], %20 {strides = array<i32>} : memref<8x128xf32, #tpu.memory_space<vmem>>, vector<8x128xf32>,
      %cst_15 = arith.constant 0.000000e+00 : f32
      %22 = vector.broadcast %cst_15 : f32 to vector<8x128xf32>
      %c0_16 = arith.constant 0 : index
      %c0_17 = arith.constant 0 : index
      %23 = vector.load %arg5[%c0_16, %c0_17] : memref<8x128xf32, #tpu.memory_space<vmem>>, vector<8x128xf32>
      tpu.vector_store %arg5[%c0_16, %c0_17], %22 {strides = array<i32>} : memref<8x128xf32, #tpu.memory_space<vmem>>, vector<8x128xf32>,
    } else {
    }
    %c0 = arith.constant 0 : index
    %c0_1 = arith.constant 0 : index
    %3 = vector.load %arg2[%c0, %c0_1] : memref<8x128xbf16, #tpu.memory_space<vmem>>, vector<8x128xbf16>
    %4 = arith.extf %3 : vector<8x128xbf16> to vector<8x128xf32>
    %5 = arith.negf %4 : vector<8x128xf32>
    %6 = math.exp %5 : vector<8x128xf32>
    %cst = arith.constant 1.000000e+00 : f32
    %7 = vector.broadcast %cst : f32 to vector<8x128xf32>
    %8 = arith.addf %7, %6 : vector<8x128xf32>
    %9 = arith.divf %7, %8 : vector<8x128xf32>
    %c0_2 = arith.constant 0 : index
    %c0_3 = arith.constant 0 : index
    %10 = vector.load %arg3[%c0_2, %c0_3] : memref<8x128xbf16, #tpu.memory_space<vmem>>, vector<8x128xbf16>
    %11 = arith.extf %10 : vector<8x128xbf16> to vector<8x128xf32>
    %12 = arith.mulf %9, %11 : vector<8x128xf32>
    %13 = arith.addf %9, %11 : vector<8x128xf32>
    %c0_4 = arith.constant 0 : index
    %c0_5 = arith.constant 0 : index
    %14 = vector.load %arg4[%c0_4, %c0_5] : memref<8x128xf32, #tpu.memory_space<vmem>>, vector<8x128xf32>
    %15 = arith.addf %14, %12 : vector<8x128xf32>
    %c0_6 = arith.constant 0 : index
    %c0_7 = arith.constant 0 : index
    %16 = vector.load %arg4[%c0_6, %c0_7] : memref<8x128xf32, #tpu.memory_space<vmem>>, vector<8x128xf32>
    tpu.vector_store %arg4[%c0_6, %c0_7], %15 {strides = array<i32>} : memref<8x128xf32, #tpu.memory_space<vmem>>, vector<8x128xf32>,
    %c0_8 = arith.constant 0 : index
    %c0_9 = arith.constant 0 : index
    %17 = vector.load %arg5[%c0_8, %c0_9] : memref<8x128xf32, #tpu.memory_space<vmem>>, vector<8x128xf32>
    %18 = arith.addf %17, %13 : vector<8x128xf32>
    %c0_10 = arith.constant 0 : index
    %c0_11 = arith.constant 0 : index
    %19 = vector.load %arg5[%c0_10, %c0_11] : memref<8x128xf32, #tpu.memory_space<vmem>>, vector<8x128xf32>
    tpu.vector_store %arg5[%c0_10, %c0_11], %18 {strides = array<i32>} : memref<8x128xf32, #tpu.memory_space<vmem>>, vector<8x128xf32>,
    return
  }
  func.func @transform_0(%arg0: i32, %arg1: i32) -> (i32, i32) {
    %c0_i32 = arith.constant 0 : i32
    return %arg0, %arg1 : i32, i32
  }
  func.func @transform_1(%arg0: i32, %arg1: i32) -> (i32, i32) {
    %c0_i32 = arith.constant 0 : i32
    return %arg0, %arg1 : i32, i32
  }
  func.func @transform_2(%arg0: i32, %arg1: i32) -> (i32, i32) {
    %c0_i32 = arith.constant 0 : i32
    %c0_i32_0 = arith.constant 0 : i32
    return %arg0, %c0_i32 : i32, i32
  }
  func.func @transform_3(%arg0: i32, %arg1: i32) -> (i32, i32) {
    %c0_i32 = arith.constant 0 : i32
    %c0_i32_0 = arith.constant 0 : i32
    return %arg0, %c0_i32 : i32, i32
  }
}

</mosaic_0001>

<llo_original>
// kernel: tpu_custom_call.1
$region0: #{tpu_custom_call.1}
  #allocation0 [shape = 'u32[]', space=smem, size = 0x4, offset = 0x4, fixed_abs, tag = 'smem constant byte address 0x4 - core index']
  #allocation1 [shape = 'u32[144,128]{1,0:T(1,128)}', space=vmem, size = 0x12000, scoped, tag = 'internal scratch']
  %s0 = inlined_call_operand.hbm [shape: bf16[8,256], index: 0, kind: input, shape index: {}]
  %s1 = inlined_call_operand.hbm [shape: bf16[8,256], index: 1, kind: input, shape index: {}]
  %s2 = inlined_call_operand.hbm [shape: f32[8,128], index: 2, kind: output, shape index: {0}]
  %s3 = inlined_call_operand.hbm [shape: f32[8,128], index: 3, kind: output, shape index: {1}]
  %4 = xla_tuple %s2, %s3
  %s5 = sld [smem:[#allocation0]]
  $region61: #{tpu_custom_call.1} parent=0
    _
  %s7 = ssub.s32 1, %s5
  %s8 = scalar_select 0, %s7, %s5
  $region1: #{tpu_custom_call.1} parent=0
    #allocation2 [shape = 'u8[4096]{0}', space=vmem, size = 0x1000, scoped, tag = 'input window, operand 0']
    #allocation3 [shape = 's32[2]{0}', space=sflag, size = 0x8, scoped, tag = 'scoped memory for tpu_custom_call.1']
    #allocation4 [shape = 's32[2]{0}', space=sflag, size = 0x8, scoped, tag = 'scoped memory for tpu_custom_call.1']
    #allocation5 [shape = 'u8[4096]{0}', space=vmem, size = 0x1000, scoped, tag = 'input window, operand 1']
    #allocation6 [shape = 's32[2]{0}', space=sflag, size = 0x8, scoped, tag = 'scoped memory for tpu_custom_call.1']
    #allocation7 [shape = 'u8[4096]{0}', space=vmem, size = 0x1000, scoped, tag = 'output window, operand 0, single buffered']
    #allocation8 [shape = 'u8[4096]{0}', space=vmem, size = 0x1000, scoped, tag = 'output window, operand 1, single buffered']
    #allocation9 [shape = 's32[1]{0}', space=sflag, size = 0x4, scoped, tag = 'scoped memory for tpu_custom_call.1']
    %9 = vsyncpa [#allocation3], 0
    %s10 = scalar_lea.sflag [#allocation3], 1
    %11 = vsyncpa %s10, 0
    %12 = vsyncpa [#allocation6], 0
    %s13 = scalar_lea.sflag [#allocation6], 1
    %14 = vsyncpa %s13, 0
    %15 = vsyncpa [#allocation4], 0
    %16 = vsyncpa [#allocation9], 0
    loop: start=0, step=1, limit=4
    $region2: #{tpu_custom_call.1} parent=1 // loop_pre_header
      _
    $region3: #{tpu_custom_call.1} parent=1 // loop_header
      %s18 = sphi 0, %s22
      %p19 = scmp.ge.s32.totalorder %s18, 4
      %s25 = sphi 0, %s37
      %s26 = sphi 0, %s33
      %s27 = sphi 0, %s25
      %s28 = sphi 0, %s26
      %s29 = sphi 0, %s27
      %s30 = sphi 0, %s28
      %s42 = sphi 0, %s44
      %s45 = sphi 0, %s42
      %s46 = sphi 0, %s45
      %s62 = sphi 0, %s46
      %s70 = sphi 0, %s72
      %s73 = sphi 0, %s70
      %s74 = sphi 0, %s73
      %s90 = sphi 0, %s74
      %s96 = sphi 0, %s98
      %s99 = sphi 0, %s96
      %s100 = sphi 0, %s99
      %s116 = sphi 0, %s100
      %s122 = sphi 0, %s124
      %s125 = sphi 0, %s122
      %s126 = sphi 0, %s125
      %s142 = sphi 0, %s126
    $region4: #{tpu_custom_call.1} parent=1 // loop_header_branch
      %21 = sbr.rel (%p19) target = $region8
    $region5: #{tpu_custom_call.1} parent=1 // loop_body
      %s23 = ssub.s32 %s18, 1
      %s24 = ssub.s32 %s18, 2
      %s31 = sadd.s32 1, %s26
      %p32 = scmp.ge.s32.totalorder %s31, 2
      %s33 = scalar_select %p32, 0, %s31
      %s34 = sadd.s32 1, %s25
      %s35 = scalar_select %p32, %s34, %s25
      %p36 = scmp.ge.s32.totalorder %s35, 1
      %s37 = scalar_select %p36, 0, %s35
      %s38 = ssub.s32 %s25, %s37
      %s39 = ssub.s32 %s26, %s33
      %s40 = sor.u32 %s38, %s39
      %p41 = scmp.eq.s32.totalorder %s40, 0
      %s43 = sadd.s32 %s42, 1
      %s44 = scalar_select %p41, %s42, %s43
      %p47 = pneg %p41
      %p48 = scmp.eq.s32.totalorder %s18, 1
      %p49 = por %p47, %p48
      %p50 = scmp.ne.s32.totalorder %s42, %s45
      %p51 = scmp.eq.s32.totalorder %s18, 0
      %p52 = por %p50, %p51
      %p53 = scmp.ne.s32.totalorder %s42, %s45
      %p54 = scmp.eq.s32.totalorder %s23, 1
      %p55 = por %p53, %p54
      %p56 = scmp.ne.s32.totalorder %s45, %s46
      %p57 = scmp.eq.s32.totalorder %s23, 0
      %p58 = por %p56, %p57
      %p59 = scmp.ne.s32.totalorder %s45, %s46
      %p60 = scmp.eq.s32.totalorder %s24, 1
      %p61 = por %p59, %p60
      %p63 = scmp.ne.s32.totalorder %s46, %s62
      %p64 = scmp.eq.s32.totalorder %s24, 0
      %p65 = por %p63, %p64
      %s66 = ssub.s32 %s25, %s37
      %s67 = ssub.s32 %s26, %s33
      %s68 = sor.u32 %s66, %s67
      %p69 = scmp.eq.s32.totalorder %s68, 0
      %s71 = sadd.s32 %s70, 1
      %s72 = scalar_select %p69, %s70, %s71
      %p75 = pneg %p69
      %p76 = scmp.eq.s32.totalorder %s18, 1
      %p77 = por %p75, %p76
      %p78 = scmp.ne.s32.totalorder %s70, %s73
      %p79 = scmp.eq.s32.totalorder %s18, 0
      %p80 = por %p78, %p79
      %p81 = scmp.ne.s32.totalorder %s70, %s73
      %p82 = scmp.eq.s32.totalorder %s23, 1
      %p83 = por %p81, %p82
      %p84 = scmp.ne.s32.totalorder %s73, %s74
      %p85 = scmp.eq.s32.totalorder %s23, 0
      %p86 = por %p84, %p85
      %p87 = scmp.ne.s32.totalorder %s73, %s74
      %p88 = scmp.eq.s32.totalorder %s24, 1
      %p89 = por %p87, %p88
      %p91 = scmp.ne.s32.totalorder %s74, %s90
      %p92 = scmp.eq.s32.totalorder %s24, 0
      %p93 = por %p91, %p92
      %s94 = ssub.s32 %s25, %s37
      %p95 = scmp.eq.s32.totalorder %s94, 0
      %s97 = sadd.s32 %s96, 1
      %s98 = scalar_select %p95, %s96, %s97
      %p101 = pneg %p95
      %p102 = scmp.eq.s32.totalorder %s18, 1
      %p103 = por %p101, %p102
      %p104 = scmp.ne.s32.totalorder %s96, %s99
      %p105 = scmp.eq.s32.totalorder %s18, 0
      %p106 = por %p104, %p105
      %p107 = scmp.ne.s32.totalorder %s96, %s99
      %p108 = scmp.eq.s32.totalorder %s23, 1
      %p109 = por %p107, %p108
      %p110 = scmp.ne.s32.totalorder %s99, %s100
      %p111 = scmp.eq.s32.totalorder %s23, 0
      %p112 = por %p110, %p111
      %p113 = scmp.ne.s32.totalorder %s99, %s100
      %p114 = scmp.eq.s32.totalorder %s24, 1
      %p115 = por %p113, %p114
      %p117 = scmp.ne.s32.totalorder %s100, %s116
      %p118 = scmp.eq.s32.totalorder %s24, 0
      %p119 = por %p117, %p118
      %s120 = ssub.s32 %s25, %s37
      %p121 = scmp.eq.s32.totalorder %s120, 0
      %s123 = sadd.s32 %s122, 1
      %s124 = scalar_select %p121, %s122, %s123
      %p127 = pneg %p121
      %p128 = scmp.eq.s32.totalorder %s18, 1
      %p129 = por %p127, %p128
      %p130 = scmp.ne.s32.totalorder %s122, %s125
      %p131 = scmp.eq.s32.totalorder %s18, 0
      %p132 = por %p130, %p131
      %p133 = scmp.ne.s32.totalorder %s122, %s125
      %p134 = scmp.eq.s32.totalorder %s23, 1
      %p135 = por %p133, %p134
      %p136 = scmp.ne.s32.totalorder %s125, %s126
      %p137 = scmp.eq.s32.totalorder %s23, 0
      %p138 = por %p136, %p137
      %p139 = scmp.ne.s32.totalorder %s125, %s126
      %p140 = scmp.eq.s32.totalorder %s24, 1
      %p141 = por %p139, %p140
      %p143 = scmp.ne.s32.totalorder %s126, %s142
      %p144 = scmp.eq.s32.totalorder %s24, 0
      %p145 = por %p143, %p144
      %p146 = scmp.le.s32.totalorder 1, %s18
      %p147 = scmp.lt.s32.totalorder %s18, 3
      %p148 = pnand %p146, %p147
      %p149 = pneg %p148
      // Predicated region
      $region9: #{tpu_custom_call.1} parent=5 // pred_check
        _
      $region10: #{tpu_custom_call.1} parent=5 // pred_check_branch
        %151 = sbr.rel (%p148) target = $region12
      $region11: #{tpu_custom_call.1} parent=5 // pred_region
        %s152 = ssub.s32 %s18, 1
      $region12: #{tpu_custom_call.1} parent=5 // pred_fallthru
        _
      %p153 = scmp.lt.s32.totalorder %s18, 2
      // Predicated region
      $region13: #{tpu_custom_call.1} parent=5 // pred_check
        %p154 = pneg %p153
      $region14: #{tpu_custom_call.1} parent=5 // pred_check_branch
        %156 = sbr.rel (%p154) target = $region16
      $region15: #{tpu_custom_call.1} parent=5 // pred_region
        // Predicated region
        $region17: #{tpu_custom_call.1} parent=15 // pred_check
          %p157 = pneg %p52
        $region18: #{tpu_custom_call.1} parent=15 // pred_check_branch
          %159 = sbr.rel (%p157) target = $region20
        $region19: #{tpu_custom_call.1} parent=15 // pred_region
          %s160 = sand.u32 %s42, 1
          %s161 = scalar_lea.sflag [#allocation3], %s160
          %s162 = sand.u32 %s42, 1
          %s163 = smul.addr %s162, 4
          %s164 = scalar_lea.vmem [#allocation2], %s163
          %s166 = ssub.s32 64, 64
          %167 = vsyncadd %s161, %s166
          %s168 = smul.addr %s25, 2
          %s169 = sadd.s32 %s26, %s168
          %s170 = smul.addr %s169, 64
          %s171 = scalar_lea.hbm %s0, %s170
          %s173 = sshll.u32 %s164, 4
          %s174 = int_to_ptr.vmem [resolvable:$true] %s173
          %176 = dma.hbm_to_vmem [thread:$0]  %s171, 64, %s174, %s161
        $region20: #{tpu_custom_call.1} parent=15 // pred_fallthru
          _
        // Predicated region
        $region21: #{tpu_custom_call.1} parent=15 // pred_check
          %p177 = pneg %p80
        $region22: #{tpu_custom_call.1} parent=15 // pred_check_branch
          %179 = sbr.rel (%p177) target = $region24
        $region23: #{tpu_custom_call.1} parent=15 // pred_region
          %s180 = sand.u32 %s70, 1
          %s181 = scalar_lea.sflag [#allocation6], %s180
          %s182 = sand.u32 %s70, 1
          %s183 = smul.addr %s182, 4
          %s184 = scalar_lea.vmem [#allocation5], %s183
          %s186 = ssub.s32 64, 64
          %187 = vsyncadd %s181, %s186
          %s188 = smul.addr %s25, 2
          %s189 = sadd.s32 %s26, %s188
          %s190 = smul.addr %s189, 64
          %s191 = scalar_lea.hbm %s1, %s190
          %s193 = sshll.u32 %s184, 4
          %s194 = int_to_ptr.vmem [resolvable:$true] %s193
          %196 = dma.hbm_to_vmem [thread:$0]  %s191, 64, %s194, %s181
        $region24: #{tpu_custom_call.1} parent=15 // pred_fallthru
          _
      $region16: #{tpu_custom_call.1} parent=5 // pred_fallthru
        _
      %p197 = scmp.le.s32.totalorder 1, %s18
      %p198 = scmp.lt.s32.totalorder %s18, 3
      %p199 = pnand %p197, %p198
      %p200 = pneg %p199
      // Predicated region
      $region25: #{tpu_custom_call.1} parent=5 // pred_check
        _
      $region26: #{tpu_custom_call.1} parent=5 // pred_check_branch
        %202 = sbr.rel (%p199) target = $region28
      $region27: #{tpu_custom_call.1} parent=5 // pred_region
        %s203 = ssub.s32 %s18, 1
        %s204 = sand.u32 %s45, 1
        %s205 = scalar_lea.sflag [#allocation3], %s204
        %s206 = sand.u32 %s45, 1
        %s207 = smul.addr %s206, 4
        %s208 = scalar_lea.vmem [#allocation2], %s207
        // Predicated region
        $region29: #{tpu_custom_call.1} parent=27 // pred_check
          %p209 = pneg %p58
        $region30: #{tpu_custom_call.1} parent=27 // pred_check_branch
          %211 = sbr.rel (%p209) target = $region32
        $region31: #{tpu_custom_call.1} parent=27 // pred_region
          %212 = dma.done %s205, 64
        $region32: #{tpu_custom_call.1} parent=27 // pred_fallthru
          _
        %s213 = sand.u32 %s73, 1
        %s214 = scalar_lea.sflag [#allocation6], %s213
        %s215 = sand.u32 %s73, 1
        %s216 = smul.addr %s215, 4
        %s217 = scalar_lea.vmem [#allocation5], %s216
        // Predicated region
        $region33: #{tpu_custom_call.1} parent=27 // pred_check
          %p218 = pneg %p86
        $region34: #{tpu_custom_call.1} parent=27 // pred_check_branch
          %220 = sbr.rel (%p218) target = $region36
        $region35: #{tpu_custom_call.1} parent=27 // pred_region
          %221 = dma.done %s214, 64
        $region36: #{tpu_custom_call.1} parent=27 // pred_fallthru
          _
        %s222 = sand.u32 %s45, 1
        %s223 = scalar_lea.sflag [#allocation3], %s222
        %s224 = sand.u32 %s45, 1
        %s225 = smul.addr %s224, 4
        %s226 = scalar_lea.vmem [#allocation2], %s225
        %p227 = pneg %p58
        %p228 = pneg %p55
        %s229 = sand.u32 %s73, 1
        %s230 = scalar_lea.sflag [#allocation6], %s229
        %s231 = sand.u32 %s73, 1
        %s232 = smul.addr %s231, 4
        %s233 = scalar_lea.vmem [#allocation5], %s232
        %p234 = pneg %p86
        %p235 = pneg %p83
        %p236 = pneg %p112
        %p237 = pneg %p109
        %p238 = pneg %p138
        %p239 = pneg %p135
        %p240 = scmp.eq.s32.totalorder %s28, 0
        // Predicated region
        $region37: #{tpu_custom_call.1} parent=27 // pred_check
          %p241 = pneg %p240
        $region38: #{tpu_custom_call.1} parent=27 // pred_check_branch
          %243 = sbr.rel (%p241) target = $region40
        $region39: #{tpu_custom_call.1} parent=27 // pred_region
          %244 = vst [vmem:[#allocation7] sm:$0xff] 0.0
          %245 = vst [vmem:[#allocation8] sm:$0xff] 0.0
        $region40: #{tpu_custom_call.1} parent=27 // pred_fallthru
          _
        %v246 = vld [vmem:[%s208] sm:$0xf]
        %v247 = vunpack.c.l.bf16 %v246
        %v248 = vxor.u32 %v247, 2147483648
        %v249 = vmul.f32 %v248, 1.442695
        %v250 = vpow.pop %v249
        %v251 = vadd.f32 %v250, 1.0
        %v252 = vrcp.pop %v251
        %v253 = vmul.f32 1.0, %v252
        %v254 = vld [vmem:[%s217] sm:$0xf]
        %v255 = vunpack.c.l.bf16 %v254
        %v256 = vmul.f32 %v253, %v255
        %v257 = vadd.f32 %v253, %v255
        %v258 = vld [vmem:[#allocation7] sm:$0xff]
        %v259 = vadd.f32 %v258, %v256
        %260 = vst [vmem:[#allocation7] sm:$0xff] %v259
        %v261 = vld [vmem:[#allocation8] sm:$0xff]
        %v262 = vadd.f32 %v261, %v257
        %263 = vst [vmem:[#allocation8] sm:$0xff] %v262
        // Predicated region
        $region41: #{tpu_custom_call.1} parent=27 // pred_check
          %p264 = pneg %p109
        $region42: #{tpu_custom_call.1} parent=27 // pred_check_branch
          %266 = sbr.rel (%p264) target = $region44
        $region43: #{tpu_custom_call.1} parent=27 // pred_region
          %s268 = ssub.s32 128, 128
          %269 = vsyncadd [#allocation4], %s268
          %s270 = smul.addr %s27, 128
          %s271 = scalar_lea.hbm %s2, %s270
          %s273 = sshll.u32 [#allocation7], 4
          %s274 = int_to_ptr.vmem [resolvable:$true] %s273
          %276 = dma.vmem_to_hbm [thread:$0]  %s274, 128, %s271, [#allocation4]
        $region44: #{tpu_custom_call.1} parent=27 // pred_fallthru
          _
        // Predicated region
        $region45: #{tpu_custom_call.1} parent=27 // pred_check
          %p277 = pneg %p135
        $region46: #{tpu_custom_call.1} parent=27 // pred_check_branch
          %279 = sbr.rel (%p277) target = $region48
        $region47: #{tpu_custom_call.1} parent=27 // pred_region
          %s281 = ssub.s32 128, 128
          %282 = vsyncadd [#allocation9], %s281
          %s283 = smul.addr %s27, 128
          %s284 = scalar_lea.hbm %s3, %s283
          %s286 = sshll.u32 [#allocation8], 4
          %s287 = int_to_ptr.vmem [resolvable:$true] %s286
          %289 = dma.vmem_to_hbm [thread:$0]  %s287, 128, %s284, [#allocation9]
        $region48: #{tpu_custom_call.1} parent=27 // pred_fallthru
          _
        // Predicated region
        $region49: #{tpu_custom_call.1} parent=27 // pred_check
          %p290 = pneg %p109
        $region50: #{tpu_custom_call.1} parent=27 // pred_check_branch
          %292 = sbr.rel (%p290) target = $region52
        $region51: #{tpu_custom_call.1} parent=27 // pred_region
          %293 = dma.done [#allocation4], 128
        $region52: #{tpu_custom_call.1} parent=27 // pred_fallthru
          _
        // Predicated region
        $region53: #{tpu_custom_call.1} parent=27 // pred_check
          %p294 = pneg %p135
        $region54: #{tpu_custom_call.1} parent=27 // pred_check_branch
          %296 = sbr.rel (%p294) target = $region56
        $region55: #{tpu_custom_call.1} parent=27 // pred_region
          %297 = dma.done [#allocation9], 128
        $region56: #{tpu_custom_call.1} parent=27 // pred_fallthru
          _
      $region28: #{tpu_custom_call.1} parent=5 // pred_fallthru
        _
      %p298 = scmp.le.s32.totalorder 2, %s18
      // Predicated region
      $region57: #{tpu_custom_call.1} parent=5 // pred_check
        %p299 = pneg %p298
      $region58: #{tpu_custom_call.1} parent=5 // pred_check_branch
        %301 = sbr.rel (%p299) target = $region60
      $region59: #{tpu_custom_call.1} parent=5 // pred_region
        %s302 = ssub.s32 %s18, 2
      $region60: #{tpu_custom_call.1} parent=5 // pred_fallthru
        _
    $region6: #{tpu_custom_call.1} parent=1 // loop_footer
      %s22 = sadd.s32 1, %s18
    $region7: #{tpu_custom_call.1} parent=1 // loop_footer_branch
      %17 = sbr.rel target = $region3
    $region8: #{tpu_custom_call.1} parent=1 // loop_exit
      _
    %303 = vsyncpa [#allocation3], 1
    %s304 = scalar_lea.sflag [#allocation3], 1
    %305 = vsyncpa %s304, 1
    %306 = vsyncpa [#allocation6], 1
    %s307 = scalar_lea.sflag [#allocation6], 1
    %308 = vsyncpa %s307, 1
    %309 = vsyncpa [#allocation4], 1
    %s310 = scalar_lea.sflag [#allocation4], 1
    %311 = vsyncpa %s310, 1
    %312 = vsyncpa [#allocation9], 1

</llo_original>
